<compile_context>
chip_gen: v6e
topology: v6e:2x2x1
jax: 0.10.0
libtpu: 0.0.40
codegen_flags: <defaults>
</compile_context>

<pallas_src>
import jax
import jax.numpy as jnp
from jax.experimental import pallas as pl
from jax.experimental.pallas import tpu as pltpu

_INV_SQRT2 = 0.7071067811865476
# Per-array block size: 2 bufs x (in + out) = 8 MiB, inside v5e's 16 MiB
# scoped-VMEM default and comfortably within v6e (32 MiB) / v7x (32 of 64 MiB).
_TARGET_BLOCK_BYTES = 2 * 1024 * 1024


def _gelu_kernel(x_ref, o_ref):
    # Exact (erf-based) GELU; compute in f32 (required on v5e for bf16 inputs).
    x = x_ref[...].astype(jnp.float32)
    y = 0.5 * x * (1.0 + jax.lax.erf(x * _INV_SQRT2))
    o_ref[...] = y.astype(o_ref.dtype)


def _gelu_exact_jnp(x):
    xf = x.astype(jnp.float32)
    return 0.5 * xf * (1.0 + jax.lax.erf(xf * _INV_SQRT2))


_IS_V7X = None


def _is_v7x():
    """Device-gated check so the 2-TensorCore grid split only applies on v7x."""
    global _IS_V7X
    if _IS_V7X is None:
        try:
            kind = jax.devices()[0].device_kind.lower()
            _IS_V7X = ("v7" in kind) or ("tpu7" in kind) or ("7x" in kind)
        except Exception:
            _IS_V7X = False
    return _IS_V7X


def _min_grid_blocks(total_bytes):
    """Minimum grid steps so the pipeline can hide one DMA leg.

    A single block means DMA-in -> compute -> DMA-out fully serialized, so
    mid-size tensors get >= 4 blocks; on v7x the 'parallel' axis is shared by
    two TensorCores, so aim for >= 8 (>= 2 balanced blocks per core)."""
    if total_bytes < (512 << 10):
        return 1
    if _is_v7x() and total_bytes >= (1 << 20):
        return 8
    return 4


def _run_gelu_2d(flat, out_dtype):
    """Fast path: n is a multiple of 128 -> (rows, 128) lane-dense 2-D slab."""
    n = flat.shape[0]
    elem_bytes = flat.dtype.itemsize
    width = 128                      # 128 lanes = unmasked vst; every block is a
    rows = n // width                # contiguous slab of the flat buffer anyway.
    x2d = flat.reshape(rows, width)

    # ~2 MiB blocks with a sublane dim that is a multiple of 8, clipped to the array.
    tile_rows = max(8, (_TARGET_BLOCK_BYTES // (width * elem_bytes)) // 8 * 8)
    tile_rows = min(tile_rows, rows)

    # Ensure enough grid steps for DMA/compute overlap (and 2-TC balance on v7x).
    min_blocks = _min_grid_blocks(n * elem_bytes)
    if min_blocks > 1 and rows >= min_blocks * 8:
        tile_rows = min(tile_rows, max(8, (rows // min_blocks) // 8 * 8))

    grid_n = pl.cdiv(rows, tile_rows)

    out2d = pl.pallas_call(
        _gelu_kernel,
        out_shape=jax.ShapeDtypeStruct((rows, width), out_dtype),
        grid_spec=pl.GridSpec(
            grid=(grid_n,),
            in_specs=[pl.BlockSpec((tile_rows, width), lambda i: (i, 0))],
            out_specs=pl.BlockSpec((tile_rows, width), lambda i: (i, 0)),
        ),
        compiler_params=pltpu.CompilerParams(
            dimension_semantics=("parallel",),
        ),
    )(x2d)
    return out2d.reshape(-1)


def _run_gelu_1d(flat, out_dtype):
    """Ragged path (n % 128 != 0, n >= 1024): a single pallas_call over the whole
    flat array.  Blocks are multiples of 1024 elements; the partial last block is
    handled by Pallas' masked store, so there is exactly 1 HBM read + 1 HBM write
    (no jnp tail, no concatenate)."""
    n = flat.shape[0]
    elem_bytes = flat.dtype.itemsize
    chunk = 8 * 128                  # one full (8,128) f32 vreg-tile worth of elements

    tile = max(chunk, (_TARGET_BLOCK_BYTES // elem_bytes) // chunk * chunk)
    tile = min(tile, (n // chunk) * chunk)       # caller guarantees n >= chunk

    min_blocks = _min_grid_blocks(n * elem_bytes)
    if min_blocks > 1 and n >= min_blocks * chunk:
        tile = min(tile, max(chunk, (n // min_blocks) // chunk * chunk))

    grid_n = pl.cdiv(n, tile)

    out = pl.pallas_call(
        _gelu_kernel,
        out_shape=jax.ShapeDtypeStruct((n,), out_dtype),
        grid_spec=pl.GridSpec(
            grid=(grid_n,),
            in_specs=[pl.BlockSpec((tile,), lambda i: (i,))],
            out_specs=pl.BlockSpec((tile,), lambda i: (i,)),
        ),
        compiler_params=pltpu.CompilerParams(
            dimension_semantics=("parallel",),
        ),
    )(flat)
    return out


def gelu_pallas(x):
    orig_shape = x.shape
    orig_dtype = x.dtype

    flat = x.reshape(-1)
    n = flat.shape[0]
    if n == 0:
        return x

    if n % 128 == 0:
        out_flat = _run_gelu_2d(flat, orig_dtype)        # common, fully aligned case
    elif n >= 1024:
        out_flat = _run_gelu_1d(flat, orig_dtype)        # ragged: single masked kernel
    else:
        # Tiny ragged tensor (< 1024 elements): a kernel launch isn't worth it.
        out_flat = _gelu_exact_jnp(flat).astype(orig_dtype)

    return out_flat.reshape(orig_shape)


if __name__ == "__main__":
    key = jax.random.PRNGKey(0)
    x = jax.random.normal(key, (2, 4, 16, 16), dtype=jnp.float32)

    y = gelu_pallas(x)
    jax.block_until_ready(y)

    # Reference: exact GELU (matches torch.nn.GELU() default).
    ref = 0.5 * x * (1.0 + jax.lax.erf(x / jnp.sqrt(2.0)))
    assert y.shape == x.shape and y.dtype == x.dtype
    assert jnp.max(jnp.abs(y - ref)) < 1e-5

    # Ragged total size (45045 elements) -> exercises the single-call masked 1-D path.
    x2 = jax.random.normal(jax.random.PRNGKey(1), (3, 7, 33, 65), dtype=jnp.float32)
    y2 = gelu_pallas(x2)
    jax.block_until_ready(y2)
    ref2 = 0.5 * x2 * (1.0 + jax.lax.erf(x2 / jnp.sqrt(2.0)))
    assert y2.shape == x2.shape and jnp.max(jnp.abs(y2 - ref2)) < 1e-5

    # Mid-size aligned shape (2 MiB) -> exercises the multi-block pipelined path.
    x3 = jax.random.normal(jax.random.PRNGKey(2), (8, 16, 64, 64), dtype=jnp.float32)
    y3 = gelu_pallas(x3)
    jax.block_until_ready(y3)
    ref3 = 0.5 * x3 * (1.0 + jax.lax.erf(x3 / jnp.sqrt(2.0)))
    assert y3.shape == x3.shape and jnp.max(jnp.abs(y3 - ref3)) < 1e-5

    print("KERNEL_OK")
</pallas_src>

<mosaic_0001>
module attributes {stable_mosaic.version = 11 : i64} {
  func.func @_gelu_kernel(%arg0: i32, %arg1: memref<16x128xf32, #tpu.memory_space<vmem>>, %arg2: memref<16x128xf32, #tpu.memory_space<vmem>>) attributes {dimension_semantics = [#tpu.dimension_semantics<parallel>], iteration_bounds = array<i64: 1>, scalar_prefetch = 0 : i64, scratch_operands = 0 : i64, tpu.core_type = #tpu.core_type<tc>, window_params = [{transform_indices = @transform_0, window_bounds = array<i64: 16, 128>}, {transform_indices = @transform_1, window_bounds = array<i64: 16, 128>}]} {
    %c0 = arith.constant 0 : index
    %c0_0 = arith.constant 0 : index
    %0 = vector.load %arg1[%c0, %c0_0] : memref<16x128xf32, #tpu.memory_space<vmem>>, vector<16x128xf32>
    %cst = arith.constant 5.000000e-01 : f32
    %1 = vector.broadcast %cst : f32 to vector<16x128xf32>
    %2 = arith.mulf %1, %0 : vector<16x128xf32>
    %cst_1 = arith.constant 0.707106769 : f32
    %3 = vector.broadcast %cst_1 : f32 to vector<16x128xf32>
    %4 = arith.mulf %0, %3 : vector<16x128xf32>
    %5 = math.erf %4 : vector<16x128xf32>
    %cst_2 = arith.constant 1.000000e+00 : f32
    %6 = vector.broadcast %cst_2 : f32 to vector<16x128xf32>
    %7 = arith.addf %6, %5 : vector<16x128xf32>
    %8 = arith.mulf %2, %7 : vector<16x128xf32>
    %c0_3 = arith.constant 0 : index
    %c0_4 = arith.constant 0 : index
    %9 = vector.load %arg2[%c0_3, %c0_4] : memref<16x128xf32, #tpu.memory_space<vmem>>, vector<16x128xf32>
    tpu.vector_store %arg2[%c0_3, %c0_4], %8 {strides = array<i32>} : memref<16x128xf32, #tpu.memory_space<vmem>>, vector<16x128xf32>,
    return
  }
  func.func @transform_0(%arg0: i32) -> (i32, i32) {
    %c0_i32 = arith.constant 0 : i32
    %c0_i32_0 = arith.constant 0 : i32
    return %arg0, %c0_i32 : i32, i32
  }
  func.func @transform_1(%arg0: i32) -> (i32, i32) {
    %c0_i32 = arith.constant 0 : i32
    %c0_i32_0 = arith.constant 0 : i32
    return %arg0, %c0_i32 : i32, i32
  }
}

</mosaic_0001>

<llo_original>
// kernel: tpu_custom_call.1
$region0: #{tpu_custom_call.1}
  #allocation0 [shape = 'u32[]', space=smem, size = 0x4, offset = 0x4, fixed_abs, tag = 'smem constant byte address 0x4 - core index']
  #allocation1 [shape = 'u32[144,128]{1,0:T(1,128)}', space=vmem, size = 0x12000, scoped, tag = 'internal scratch']
  %s0 = inlined_call_operand.hbm [shape: f32[16,128], index: 0, kind: input, shape index: {}]
  %s1 = inlined_call_operand.hbm [shape: f32[16,128], index: 1, kind: output, shape index: {}]
  %s2 = sld [smem:[#allocation0]]
  $region18: #{tpu_custom_call.1} parent=0
    _
  %s4 = ssub.s32 1, %s2
  %s5 = scalar_select 0, %s4, %s2
  $region1: #{tpu_custom_call.1} parent=0
    #allocation2 [shape = 'u8[8192]{0}', space=vmem, size = 0x2000, scoped, tag = 'input window, operand 0, single buffered']
    #allocation3 [shape = 's32[1]{0}', space=sflag, size = 0x4, scoped, tag = 'scoped memory for tpu_custom_call.1']
    #allocation4 [shape = 's32[1]{0}', space=sflag, size = 0x4, scoped, tag = 'scoped memory for tpu_custom_call.1']
    #allocation5 [shape = 'u8[8192]{0}', space=vmem, size = 0x2000, scoped, tag = 'output window, operand 0, single buffered']
    %6 = vsyncpa [#allocation3], 0
    %7 = vsyncpa [#allocation4], 0
    // Predicated region
    $region2: #{tpu_custom_call.1} parent=1 // pred_check
      _
    $region3: #{tpu_custom_call.1} parent=1 // pred_check_branch
      %9 = sbr.rel (0) target = $region5
    $region4: #{tpu_custom_call.1} parent=1 // pred_region
      %s11 = ssub.s32 256, 256
      %12 = vsyncadd [#allocation3], %s11
      %s13 = sshll.u32 [#allocation2], 4
      %s14 = int_to_ptr.vmem [resolvable:$true] %s13
      %19 = dma.hbm_to_vmem [thread:$0]  %s0, 256, %s14, [#allocation3], 128, 128, 8
    $region5: #{tpu_custom_call.1} parent=1 // pred_fallthru
      _
    // Predicated region
    $region6: #{tpu_custom_call.1} parent=1 // pred_check
      _
    $region7: #{tpu_custom_call.1} parent=1 // pred_check_branch
      %21 = sbr.rel (0) target = $region9
    $region8: #{tpu_custom_call.1} parent=1 // pred_region
      %22 = dma.done [#allocation3], 256
    $region9: #{tpu_custom_call.1} parent=1 // pred_fallthru
      _
    %v23 = vld [vmem:[#allocation2] sm:$0xff]
    %v24 = vld [vmem:[#allocation2 + $0x8] sm:$0xff]
    %v25 = vmul.f32 %v23, 0.5
    %v26 = vmul.f32 %v24, 0.5
    %v27 = vmul.f32 %v23, 0.70710677
    %v28 = vmul.f32 %v24, 0.70710677
    %v29 = verf.f32.pop %v27
    %v30 = verf.f32.pop %v28
    %v31 = vadd.f32 %v29, 1.0
    %v32 = vadd.f32 %v30, 1.0
    %v33 = vmul.f32 %v25, %v31
    %v34 = vmul.f32 %v26, %v32
    %35 = vst [vmem:[#allocation5] sm:$0xff] %v33
    %36 = vst [vmem:[#allocation5 + $0x8] sm:$0xff] %v34
    // Predicated region
    $region10: #{tpu_custom_call.1} parent=1 // pred_check
      _
    $region11: #{tpu_custom_call.1} parent=1 // pred_check_branch
      %38 = sbr.rel (0) target = $region13
    $region12: #{tpu_custom_call.1} parent=1 // pred_region
      %s40 = ssub.s32 256, 256
      %41 = vsyncadd [#allocation4], %s40
      %s42 = sshll.u32 [#allocation5], 4
      %s43 = int_to_ptr.vmem [resolvable:$true] %s42
      %48 = dma.vmem_to_hbm [thread:$0]  %s43, 256, %s1, [#allocation4], 128, 128, 8
    $region13: #{tpu_custom_call.1} parent=1 // pred_fallthru
      _
    // Predicated region
    $region14: #{tpu_custom_call.1} parent=1 // pred_check
      _
    $region15: #{tpu_custom_call.1} parent=1 // pred_check_branch
      %50 = sbr.rel (0) target = $region17
    $region16: #{tpu_custom_call.1} parent=1 // pred_region
      %51 = dma.done [#allocation4], 256
    $region17: #{tpu_custom_call.1} parent=1 // pred_fallthru
      _
    %52 = vsyncpa [#allocation3], 1
    %53 = vsyncpa [#allocation4], 1

</llo_original>
